<compile_context>
chip_gen: v7x
topology: tpu7x:2x2x1
jax: 0.10.0
libtpu: 0.0.40
codegen_flags: <defaults>
</compile_context>

<pallas_src>
import functools

import jax
import jax.numpy as jnp
from jax.experimental import pallas as pl
from jax.experimental.pallas import tpu as pltpu


def _cdiv(a, b):
    return -(-a // b)


# ---------------------------------------------------------------------------
# Parameter setup (mirrors NonnegativeParameterizer + reset_parameters)
# ---------------------------------------------------------------------------
def make_gdn_params(num_features, gamma_init=0.1, offset=2.0 ** (-18)):
    pedestal = offset ** 2
    # reset_parameters(): weight = sqrt(relu(eye*gamma_init) + pedestal)
    weight = jnp.sqrt(jnp.maximum(jnp.eye(num_features, dtype=jnp.float32) * gamma_init, 0.0)
                      + pedestal)
    bias = jnp.sqrt(jnp.maximum(jnp.ones((num_features,), dtype=jnp.float32), 0.0) + pedestal)
    # gamma / beta properties: lower_bound(param, sqrt(pedestal))^2 - pedestal
    bound = (0.0 + pedestal) ** 0.5
    gamma = jnp.maximum(weight, bound) ** 2 - pedestal
    beta = jnp.maximum(bias, bound) ** 2 - pedestal
    return gamma, beta


# ---------------------------------------------------------------------------
# Pallas kernel body
# ---------------------------------------------------------------------------
def _gdn_kernel(gamma_ref, beta_ref, x_ref, o_ref, *, inverse, simplify, approx_recip):
    # x_ref / o_ref blocks: (C, tl) -- batch dim squeezed out via BlockSpec None.
    x = x_ref[...]                       # (C, tl) input dtype
    gamma = gamma_ref[...]               # (C, C) MXU operand dtype (resident)
    beta = beta_ref[...]                 # (C, 1) f32 == beta + eps   (resident)

    xf = x.astype(jnp.float32)
    if simplify:
        # norm_pool[i, l] = sum_j gamma[i, j] * |x[j, l]| + (beta[i] + eps)
        operand = jnp.abs(x).astype(gamma.dtype)
    else:
        # Square on the VPU in f32 (dynamic range), cast only for the MXU feed.
        operand = (xf * xf).astype(gamma.dtype)

    pooled = jnp.dot(gamma, operand, preferred_element_type=jnp.float32) + beta

    if simplify:
        if inverse:
            out = xf * pooled
        else:
            if approx_recip:
                inv = pl.reciprocal(pooled, approx=True)     # EUP vrcp (free slot)
                inv = inv * (2.0 - pooled * inv)             # one Newton refinement
                out = xf * inv
            else:
                out = xf / pooled
    else:
        if inverse:
            out = xf * jnp.sqrt(pooled)
        else:
            out = xf * jax.lax.rsqrt(pooled)                 # fused sqrt+divide on EUP

    o_ref[...] = out.astype(o_ref.dtype)


# ---------------------------------------------------------------------------
# Wrapper
# ---------------------------------------------------------------------------
def _vmem_capacity_bytes():
    try:
        return int(pltpu.get_tpu_info().vmem_capacity_bytes)
    except Exception:
        return 64 << 20  # conservative (v7x-sized) fallback


def generalized_divisive_norm_pallas(x, gamma, beta, *, inverse=False, simplify=True,
                                     eps=1e-5, approx_recip=True, lane_buffering=2):
    """GDN / IGDN forward.  x: (B, C, ...spatial) in PyTorch NCHW-style layout."""
    orig_shape = x.shape
    orig_dtype = x.dtype
    B, C = int(x.shape[0]), int(x.shape[1])
    L = 1
    for d in x.shape[2:]:
        L *= int(d)
    L = max(L, 1)

    # Pure view -- no batch-fold transpose, no padding, no post-slice.
    x3 = x.reshape(B, C, L)

    # MXU operand dtype: bf16 only when the input is bf16 (f32 inputs keep f32
    # operands so the 1e-5 reference tolerance still holds).
    use_bf16 = (orig_dtype == jnp.bfloat16)
    mxu_dtype = jnp.bfloat16 if use_bf16 else jnp.float32
    gamma_k = gamma.astype(mxu_dtype)                          # (C, C), VMEM resident
    beta_k = (beta.astype(jnp.float32) + eps).reshape(C, 1)    # (C, 1), VMEM resident

    # --- lane-tile: target ~2 MiB of f32 per x tile (roofline saturates at
    # 1-4 MiB tiles), capped at 4096 lanes; multiple of 128 for lane-dense stores.
    target_tile_bytes = 2 << 20
    tl = (target_tile_bytes // (4 * C)) // 128 * 128
    tl = int(max(128, min(tl, 4096)))
    if B == 1 and L > 256:
        # v7x has 2 TensorCores: guarantee >= 2 'parallel' grid steps.
        tl = min(tl, _cdiv(_cdiv(L, 2), 128) * 128)
    if L <= tl:
        tl = L   # single full-extent lane tile (block dim == array dim is allowed)
    grid = (B, _cdiv(L, tl))   # ragged last lane tile handled by Pallas (masked store)

    vmem_cap = _vmem_capacity_bytes()
    vmem_limit = int(min(vmem_cap * 3 // 4, 64 << 20))   # 48 MiB on v7x, 64 MiB on v5e/v6e

    # Advisory cost estimate for the XLA scheduler.
    elem_total = B * C * L
    flops = 2 * C * C * L * B + 3 * elem_total
    transcendentals = 0 if (simplify and inverse) else elem_total
    bytes_accessed = (2 * elem_total * jnp.dtype(orig_dtype).itemsize
                      + gamma_k.size * jnp.dtype(mxu_dtype).itemsize
                      + beta_k.size * 4)

    # Optional deeper input buffering (sweepable); default 2 == standard pipeline.
    x_spec_kwargs = {}
    if lane_buffering != 2:
        x_spec_kwargs["pipeline_mode"] = pl.Buffered(lane_buffering)
    x_spec = pl.BlockSpec((None, C, tl), lambda b, l: (b, 0, l), **x_spec_kwargs)

    kernel = functools.partial(_gdn_kernel, inverse=inverse, simplify=simplify,
                               approx_recip=approx_recip)

    out = pl.pallas_call(
        kernel,
        out_shape=jax.ShapeDtypeStruct((B, C, L), orig_dtype),
        grid_spec=pltpu.PrefetchScalarGridSpec(
            num_scalar_prefetch=0,
            grid=grid,
            in_specs=[
                pl.BlockSpec((C, C), lambda b, l: (0, 0)),     # gamma (resident)
                pl.BlockSpec((C, 1), lambda b, l: (0, 0)),     # beta + eps (resident)
                x_spec,                                        # x lane tile
            ],
            out_specs=pl.BlockSpec((None, C, tl), lambda b, l: (b, 0, l)),
        ),
        compiler_params=pltpu.CompilerParams(
            dimension_semantics=("parallel", "parallel"),
            vmem_limit_bytes=vmem_limit),
        cost_estimate=pl.CostEstimate(flops=int(flops),
                                      transcendentals=int(transcendentals),
                                      bytes_accessed=int(bytes_accessed)),
    )(gamma_k, beta_k, x3)

    return out.reshape(orig_shape)


# ---------------------------------------------------------------------------
# Pure-JAX reference (mirrors torch generalized_divisive_norm)
# ---------------------------------------------------------------------------
def gdn_reference(x, gamma, beta, *, inverse=False, simplify=True, eps=1e-5):
    B, C = x.shape[0], x.shape[1]
    xf = x.reshape(B, C, -1)
    if simplify:
        pooled = jnp.einsum("ij,bjl->bil", gamma, jnp.abs(xf)) + (beta + eps)[None, :, None]
    else:
        pooled = jnp.sqrt(jnp.einsum("ij,bjl->bil", gamma, xf * xf)
                          + (beta + eps)[None, :, None])
    out = xf * pooled if inverse else xf / pooled
    return out.reshape(x.shape)


if __name__ == "__main__":
    key = jax.random.PRNGKey(0)

    # --- GDN (simplify, forward) path, (B, C, H, W) ---
    num_features = 4
    gamma, beta = make_gdn_params(num_features, gamma_init=0.1)
    k1, k2 = jax.random.split(key)
    x = jax.random.normal(k1, (2, num_features, 16, 16), dtype=jnp.float32)

    y = generalized_divisive_norm_pallas(x, gamma, beta,
                                         inverse=False, simplify=True, eps=1e-5)
    y = jax.block_until_ready(y)
    y_ref = gdn_reference(x, gamma, beta, inverse=False, simplify=True, eps=1e-5)
    assert y.shape == x.shape
    assert jnp.allclose(y, y_ref, atol=1e-5, rtol=1e-5), "mismatch vs reference (GDN)"

    # --- IGDN (non-simplify, inverse) path ---
    y2 = generalized_divisive_norm_pallas(x, gamma, beta,
                                          inverse=True, simplify=False, eps=1e-5)
    y2 = jax.block_until_ready(y2)
    y2_ref = gdn_reference(x, gamma, beta, inverse=True, simplify=False, eps=1e-5)
    assert jnp.allclose(y2, y2_ref, atol=1e-5, rtol=1e-5), "mismatch vs reference (IGDN)"

    # --- B == 1 with a non-multiple-of-128 spatial extent: exercises the
    #     two-tile split (v7x) and the ragged last lane tile (masked store). ---
    c3 = 8
    gamma3, beta3 = make_gdn_params(c3, gamma_init=0.1)
    x3 = jax.random.normal(k2, (1, c3, 300), dtype=jnp.float32)
    y3 = generalized_divisive_norm_pallas(x3, gamma3, beta3,
                                          inverse=False, simplify=True, eps=1e-5)
    y3 = jax.block_until_ready(y3)
    y3_ref = gdn_reference(x3, gamma3, beta3, inverse=False, simplify=True, eps=1e-5)
    assert jnp.allclose(y3, y3_ref, atol=1e-5, rtol=1e-5), "mismatch vs reference (ragged)"

    print("KERNEL_OK")
</pallas_src>

<mosaic_0001>
module attributes {stable_mosaic.version = 11 : i64} {
  func.func @_gdn_kernel(%arg0: i32, %arg1: i32, %arg2: memref<4x4xf32, #tpu.memory_space<vmem>>, %arg3: memref<4x1xf32, #tpu.memory_space<vmem>>, %arg4: memref<1x4x256xf32, #tpu.memory_space<vmem>>, %arg5: memref<1x4x256xf32, #tpu.memory_space<vmem>>) attributes {dimension_semantics = [#tpu.dimension_semantics<parallel>, #tpu.dimension_semantics<parallel>], iteration_bounds = array<i64: 2, 1>, scalar_prefetch = 0 : i64, scratch_operands = 0 : i64, tpu.core_type = #tpu.core_type<tc>, window_params = [{pipeline_mode = #tpu.pipeline_mode<synchronous>, transform_indices = @transform_0, window_bounds = array<i64: 4, 4>}, {pipeline_mode = #tpu.pipeline_mode<synchronous>, transform_indices = @transform_1, window_bounds = array<i64: 4, 1>}, {transform_indices = @transform_2, window_bounds = array<i64: 1, 4, 256>}, {transform_indices = @transform_3, window_bounds = array<i64: 1, 4, 256>}]} {
    %c0 = arith.constant 0 : index
    %c0_0 = arith.constant 0 : index
    %c0_1 = arith.constant 0 : index
    %0 = vector.load %arg4[%c0, %c0_0, %c0_1] : memref<1x4x256xf32, #tpu.memory_space<vmem>>, vector<1x4x256xf32>
    %1 = vector.shape_cast %0 : vector<1x4x256xf32> to vector<4x256xf32>
    %c0_2 = arith.constant 0 : index
    %c0_3 = arith.constant 0 : index
    %2 = vector.load %arg2[%c0_2, %c0_3] : memref<4x4xf32, #tpu.memory_space<vmem>>, vector<4x4xf32>
    %c0_4 = arith.constant 0 : index
    %c0_5 = arith.constant 0 : index
    %3 = vector.load %arg3[%c0_4, %c0_5] : memref<4x1xf32, #tpu.memory_space<vmem>>, vector<4x1xf32>
    %4 = math.absf %1 : vector<4x256xf32>
    %cst = arith.constant dense<0.000000e+00> : vector<4x256xf32>
    %5 = tpu.matmul %2, %4, %cst {dimension_numbers = #tpu.dot_dimension_numbers<[1], [0], [0], [1], [0, 0, 1, 1], [], []>} : vector<4x4xf32>, vector<4x256xf32>, vector<4x256xf32> -> vector<4x256xf32>
    %6 = vector.broadcast %3 : vector<4x1xf32> to vector<4x256xf32>
    %7 = arith.addf %5, %6 : vector<4x256xf32>
    %8 = tpu.reciprocal %7 {approx = true} : vector<4x256xf32> -> vector<4x256xf32>
    %9 = arith.mulf %7, %8 : vector<4x256xf32>
    %cst_6 = arith.constant 2.000000e+00 : f32
    %10 = vector.broadcast %cst_6 : f32 to vector<4x256xf32>
    %11 = arith.subf %10, %9 : vector<4x256xf32>
    %12 = arith.mulf %8, %11 : vector<4x256xf32>
    %13 = arith.mulf %1, %12 : vector<4x256xf32>
    %c0_7 = arith.constant 0 : index
    %c0_8 = arith.constant 0 : index
    %c0_9 = arith.constant 0 : index
    %14 = vector.load %arg5[%c0_7, %c0_8, %c0_9] : memref<1x4x256xf32, #tpu.memory_space<vmem>>, vector<1x4x256xf32>
    %15 = vector.shape_cast %14 : vector<1x4x256xf32> to vector<4x256xf32>
    %16 = vector.shape_cast %13 : vector<4x256xf32> to vector<1x4x256xf32>
    tpu.vector_store %arg5[%c0_7, %c0_8, %c0_9], %16 {strides = array<i32>} : memref<1x4x256xf32, #tpu.memory_space<vmem>>, vector<1x4x256xf32>,
    return
  }
  func.func @transform_0(%arg0: i32, %arg1: i32) -> (i32, i32) {
    %c0_i32 = arith.constant 0 : i32
    %c0_i32_0 = arith.constant 0 : i32
    %c0_i32_1 = arith.constant 0 : i32
    return %c0_i32, %c0_i32_0 : i32, i32
  }
  func.func @transform_1(%arg0: i32, %arg1: i32) -> (i32, i32) {
    %c0_i32 = arith.constant 0 : i32
    %c0_i32_0 = arith.constant 0 : i32
    %c0_i32_1 = arith.constant 0 : i32
    return %c0_i32, %c0_i32_0 : i32, i32
  }
  func.func @transform_2(%arg0: i32, %arg1: i32) -> (i32, i32, i32) {
    %c0_i32 = arith.constant 0 : i32
    %c0_i32_0 = arith.constant 0 : i32
    return %arg0, %c0_i32, %arg1 : i32, i32, i32
  }
  func.func @transform_3(%arg0: i32, %arg1: i32) -> (i32, i32, i32) {
    %c0_i32 = arith.constant 0 : i32
    %c0_i32_0 = arith.constant 0 : i32
    return %arg0, %c0_i32, %arg1 : i32, i32, i32
  }
}

</mosaic_0001>

<llo_original>
// kernel: tpu_custom_call.1
$region0: #{tpu_custom_call.1}
  #allocation0 [shape = 'u32[]', space=smem, size = 0x4, offset = 0x4, fixed_abs, tag = 'smem constant byte address 0x4 - core index']
  #allocation1 [shape = 'u32[144,128]{1,0:T(1,128)}', space=vmem, size = 0x12000, scoped, tag = 'internal scratch']
  %s0 = inlined_call_operand.vmem [shape: f32[4,4], index: 0, kind: input, shape index: {}]
  %s1 = inlined_call_operand.vmem [shape: f32[4,1], index: 1, kind: input, shape index: {}]
  %s2 = inlined_call_operand.hbm [shape: f32[2,4,256], index: 2, kind: input, shape index: {}]
  %s3 = inlined_call_operand.hbm [shape: f32[2,4,256], index: 3, kind: output, shape index: {}]
  %s4 = sld [smem:[#allocation0]]
  $region49: #{tpu_custom_call.1} parent=0
    _
  %s6 = ssub.s32 1, %s4
  %s7 = scalar_select 0, %s6, %s4
  $region1: #{tpu_custom_call.1} parent=0
    #allocation2 [shape = 'u8[8192]{0}', space=vmem, size = 0x2000, scoped, tag = 'input window, operand 2']
    #allocation3 [shape = 's32[2]{0}', space=sflag, size = 0x8, scoped, tag = 'scoped memory for tpu_custom_call.1']
    #allocation4 [shape = 's32[2]{0}', space=sflag, size = 0x8, scoped, tag = 'scoped memory for tpu_custom_call.1']
    #allocation5 [shape = 'u8[8192]{0}', space=vmem, size = 0x2000, scoped, tag = 'output window, operand 0']
    %8 = vsyncpa [#allocation3], 0
    %s9 = scalar_lea.sflag [#allocation3], 1
    %10 = vsyncpa %s9, 0
    %11 = vsyncpa [#allocation4], 0
    %s12 = scalar_lea.sflag [#allocation4], 1
    %13 = vsyncpa %s12, 0
    loop: start=0, step=1, limit=4
    $region2: #{tpu_custom_call.1} parent=1 // loop_pre_header
      _
    $region3: #{tpu_custom_call.1} parent=1 // loop_header
      %s15 = sphi 0, %s19
      %p16 = scmp.ge.s32.totalorder %s15, 4
      %s22 = sphi 0, %s34
      %s23 = sphi 0, %s30
      %s24 = sphi 0, %s22
      %s25 = sphi 0, %s23
      %s26 = sphi 0, %s24
      %s27 = sphi 0, %s25
      %s35 = sphi 0, %s35
      %s37 = sphi 0, %s35
      %s38 = sphi 0, %s37
      %s52 = sphi 0, %s38
      %s56 = sphi 0, %s56
      %s58 = sphi 0, %s56
      %s59 = sphi 0, %s58
      %s73 = sphi 0, %s59
      %s81 = sphi 0, %s83
      %s84 = sphi 0, %s81
      %s85 = sphi 0, %s84
      %s101 = sphi 0, %s85
      %s109 = sphi 0, %s111
      %s112 = sphi 0, %s109
      %s113 = sphi 0, %s112
      %s129 = sphi 0, %s113
    $region4: #{tpu_custom_call.1} parent=1 // loop_header_branch
      %18 = sbr.rel (%p16) target = $region8
    $region5: #{tpu_custom_call.1} parent=1 // loop_body
      %s20 = ssub.s32 %s15, 1
      %s21 = ssub.s32 %s15, 2
      %s28 = sadd.s32 1, %s23
      %p29 = scmp.ge.s32.totalorder %s28, 1
      %s30 = scalar_select %p29, 0, %s28
      %s31 = sadd.s32 1, %s22
      %s32 = scalar_select %p29, %s31, %s22
      %p33 = scmp.ge.s32.totalorder %s32, 2
      %s34 = scalar_select %p33, 0, %s32
      %s36 = sadd.s32 %s35, 1
      %p39 = scmp.eq.s32.totalorder %s15, 1
      %p40 = scmp.ne.s32.totalorder %s35, %s37
      %p41 = scmp.eq.s32.totalorder %s15, 0
      %p42 = por %p40, %p41
      %p43 = scmp.ne.s32.totalorder %s35, %s37
      %p44 = scmp.eq.s32.totalorder %s20, 1
      %p45 = por %p43, %p44
      %p46 = scmp.ne.s32.totalorder %s37, %s38
      %p47 = scmp.eq.s32.totalorder %s20, 0
      %p48 = por %p46, %p47
      %p49 = scmp.ne.s32.totalorder %s37, %s38
      %p50 = scmp.eq.s32.totalorder %s21, 1
      %p51 = por %p49, %p50
      %p53 = scmp.ne.s32.totalorder %s38, %s52
      %p54 = scmp.eq.s32.totalorder %s21, 0
      %p55 = por %p53, %p54
      %s57 = sadd.s32 %s56, 1
      %p60 = scmp.eq.s32.totalorder %s15, 1
      %p61 = scmp.ne.s32.totalorder %s56, %s58
      %p62 = scmp.eq.s32.totalorder %s15, 0
      %p63 = por %p61, %p62
      %p64 = scmp.ne.s32.totalorder %s56, %s58
      %p65 = scmp.eq.s32.totalorder %s20, 1
      %p66 = por %p64, %p65
      %p67 = scmp.ne.s32.totalorder %s58, %s59
      %p68 = scmp.eq.s32.totalorder %s20, 0
      %p69 = por %p67, %p68
      %p70 = scmp.ne.s32.totalorder %s58, %s59
      %p71 = scmp.eq.s32.totalorder %s21, 1
      %p72 = por %p70, %p71
      %p74 = scmp.ne.s32.totalorder %s59, %s73
      %p75 = scmp.eq.s32.totalorder %s21, 0
      %p76 = por %p74, %p75
      %s77 = ssub.s32 %s22, %s34
      %s78 = ssub.s32 %s23, %s30
      %s79 = sor.u32 %s77, %s78
      %p80 = scmp.eq.s32.totalorder %s79, 0
      %s82 = sadd.s32 %s81, 1
      %s83 = scalar_select %p80, %s81, %s82
      %p86 = pneg %p80
      %p87 = scmp.eq.s32.totalorder %s15, 1
      %p88 = por %p86, %p87
      %p89 = scmp.ne.s32.totalorder %s81, %s84
      %p90 = scmp.eq.s32.totalorder %s15, 0
      %p91 = por %p89, %p90
      %p92 = scmp.ne.s32.totalorder %s81, %s84
      %p93 = scmp.eq.s32.totalorder %s20, 1
      %p94 = por %p92, %p93
      %p95 = scmp.ne.s32.totalorder %s84, %s85
      %p96 = scmp.eq.s32.totalorder %s20, 0
      %p97 = por %p95, %p96
      %p98 = scmp.ne.s32.totalorder %s84, %s85
      %p99 = scmp.eq.s32.totalorder %s21, 1
      %p100 = por %p98, %p99
      %p102 = scmp.ne.s32.totalorder %s85, %s101
      %p103 = scmp.eq.s32.totalorder %s21, 0
      %p104 = por %p102, %p103
      %s105 = ssub.s32 %s22, %s34
      %s106 = ssub.s32 %s23, %s30
      %s107 = sor.u32 %s105, %s106
      %p108 = scmp.eq.s32.totalorder %s107, 0
      %s110 = sadd.s32 %s109, 1
      %s111 = scalar_select %p108, %s109, %s110
      %p114 = pneg %p108
      %p115 = scmp.eq.s32.totalorder %s15, 1
      %p116 = por %p114, %p115
      %p117 = scmp.ne.s32.totalorder %s109, %s112
      %p118 = scmp.eq.s32.totalorder %s15, 0
      %p119 = por %p117, %p118
      %p120 = scmp.ne.s32.totalorder %s109, %s112
      %p121 = scmp.eq.s32.totalorder %s20, 1
      %p122 = por %p120, %p121
      %p123 = scmp.ne.s32.totalorder %s112, %s113
      %p124 = scmp.eq.s32.totalorder %s20, 0
      %p125 = por %p123, %p124
      %p126 = scmp.ne.s32.totalorder %s112, %s113
      %p127 = scmp.eq.s32.totalorder %s21, 1
      %p128 = por %p126, %p127
      %p130 = scmp.ne.s32.totalorder %s113, %s129
      %p131 = scmp.eq.s32.totalorder %s21, 0
      %p132 = por %p130, %p131
      %p133 = scmp.le.s32.totalorder 1, %s15
      %p134 = scmp.lt.s32.totalorder %s15, 3
      %p135 = pnand %p133, %p134
      %p136 = pneg %p135
      // Predicated region
      $region9: #{tpu_custom_call.1} parent=5 // pred_check
        _
      $region10: #{tpu_custom_call.1} parent=5 // pred_check_branch
        %138 = sbr.rel (%p135) target = $region12
      $region11: #{tpu_custom_call.1} parent=5 // pred_region
        %s139 = ssub.s32 %s15, 1
        // Predicated region
        $region13: #{tpu_custom_call.1} parent=11 // pred_check
          %p140 = pneg %p48
        $region14: #{tpu_custom_call.1} parent=11 // pred_check_branch
          %142 = sbr.rel (%p140) target = $region16
        $region15: #{tpu_custom_call.1} parent=11 // pred_region
          _
        $region16: #{tpu_custom_call.1} parent=11 // pred_fallthru
          _
        // Predicated region
        $region17: #{tpu_custom_call.1} parent=11 // pred_check
          %p143 = pneg %p69
        $region18: #{tpu_custom_call.1} parent=11 // pred_check_branch
          %145 = sbr.rel (%p143) target = $region20
        $region19: #{tpu_custom_call.1} parent=11 // pred_region
          _
        $region20: #{tpu_custom_call.1} parent=11 // pred_fallthru
          _
      $region12: #{tpu_custom_call.1} parent=5 // pred_fallthru
        _
      %p146 = scmp.lt.s32.totalorder %s15, 2
      // Predicated region
      $region21: #{tpu_custom_call.1} parent=5 // pred_check
        %p147 = pneg %p146
      $region22: #{tpu_custom_call.1} parent=5 // pred_check_branch
        %149 = sbr.rel (%p147) target = $region24
      $region23: #{tpu_custom_call.1} parent=5 // pred_region
        // Predicated region
        $region25: #{tpu_custom_call.1} parent=23 // pred_check
          %p150 = pneg %p91
        $region26: #{tpu_custom_call.1} parent=23 // pred_check_branch
          %152 = sbr.rel (%p150) target = $region28
        $region27: #{tpu_custom_call.1} parent=23 // pred_region
          %s153 = sand.u32 %s81, 1
          %s154 = scalar_lea.sflag [#allocation3], %s153
          %s155 = sand.u32 %s81, 1
          %s156 = smul.addr %s155, 8
          %s157 = scalar_lea.vmem [#allocation2], %s156
          %s158 = smul.u32 2, %s23
          %s160 = ssub.s32 128, 128
          %161 = vsyncadd %s154, %s160
          %s162 = smul.addr %s22, 2
          %s163 = sadd.s32 %s158, %s162
          %s164 = smul.addr %s163, 64
          %s165 = scalar_lea.hbm %s2, %s164
          %s167 = sshll.u32 %s157, 4
          %s168 = int_to_ptr.vmem [resolvable:$true] %s167
          %170 = dma.hbm_to_vmem [thread:$0]  %s165, 128, %s168, %s154
        $region28: #{tpu_custom_call.1} parent=23 // pred_fallthru
          _
      $region24: #{tpu_custom_call.1} parent=5 // pred_fallthru
        _
      %p171 = scmp.le.s32.totalorder 1, %s15
      %p172 = scmp.lt.s32.totalorder %s15, 3
      %p173 = pnand %p171, %p172
      %p174 = pneg %p173
      // Predicated region
      $region29: #{tpu_custom_call.1} parent=5 // pred_check
        _
      $region30: #{tpu_custom_call.1} parent=5 // pred_check_branch
        %176 = sbr.rel (%p173) target = $region32
      $region31: #{tpu_custom_call.1} parent=5 // pred_region
        %s177 = ssub.s32 %s15, 1
        %s178 = sand.u32 %s84, 1
        %s179 = scalar_lea.sflag [#allocation3], %s178
        %s180 = sand.u32 %s84, 1
        %s181 = smul.addr %s180, 8
        %s182 = scalar_lea.vmem [#allocation2], %s181
        // Predicated region
        $region33: #{tpu_custom_call.1} parent=31 // pred_check
          %p183 = pneg %p97
        $region34: #{tpu_custom_call.1} parent=31 // pred_check_branch
          %185 = sbr.rel (%p183) target = $region36
        $region35: #{tpu_custom_call.1} parent=31 // pred_region
          %186 = dma.done %s179, 128
        $region36: #{tpu_custom_call.1} parent=31 // pred_fallthru
          _
        %p187 = pneg %p48
        %p188 = pneg %p45
        %p189 = pneg %p69
        %p190 = pneg %p66
        %s191 = sand.u32 %s84, 1
        %s192 = scalar_lea.sflag [#allocation3], %s191
        %s193 = sand.u32 %s84, 1
        %s194 = smul.addr %s193, 8
        %s195 = scalar_lea.vmem [#allocation2], %s194
        %p196 = pneg %p97
        %p197 = pneg %p94
        %p198 = pneg %p125
        %p199 = pneg %p122
        %s200 = sand.u32 %s112, 1
        %s201 = scalar_lea.sflag [#allocation4], %s200
        %s202 = sand.u32 %s112, 1
        %s203 = smul.addr %s202, 8
        %s204 = scalar_lea.vmem [#allocation5], %s203
        %s205 = smul.u32 2, %s25
        %s206 = smul.u32 2, %s25
        %v207 = vld [vmem:[%s182] sm:$0xff]
        %v208 = vld [vmem:[%s0] sm:$0xf]
        %v209 = vld [vmem:[%s1] sm:$0xf]
        %v210 = vand.u32 2147483647, %v207
        %212 = vset.pattern.permute.xlu0 0
        %213 = vperm.xlu0 %212, %v209
        %v214 = vpop.permute.xlu0 %213
        %v217 = vcombine.high %v210, %v210
        %vm218 = vcmask 31744
        %v220 = vsel %vm218, %v208, 0
        %vm222 = vcmask 1043456
        %v223 = vsel %vm222, %v210, 0
        %v225 = vsel %vm222, %v217, 0
        %227 = vmatprep.subr.mxu0 %v225
        %228 = vmatpush1.msra.mxu0 %v223
        %229 = vmatprep.subr.mxu0 0.0
        %230 = vmatpush1.msra.mxu0 0.0
        %231 = vmatprep.subr.mxu0 0.0
        %232 = vmatpush1.msra.mxu0 0.0
        %233 = vmatprep.subr.mxu0 0.0
        %234 = vmatpush1.msra.mxu0 0.0
        %235 = vmatprep.subr.mxu0 0.0
        %236 = vmatpush1.msra.mxu0 0.0
        %237 = vmatprep.subr.mxu0 0.0
        %238 = vmatpush1.msra.mxu0 0.0
        %239 = vmatprep.subr.mxu0 0.0
        %240 = vmatpush1.msra.mxu0 0.0
        %241 = vmatprep.subr.mxu0 0.0
        %242 = vmatpush1.msra.mxu0 0.0
        %243 = vmatprep.subr.mxu0 0.0
        %244 = vmatpush1.msra.mxu0 0.0
        %245 = vmatprep.subr.mxu0 0.0
        %246 = vmatpush1.msra.mxu0 0.0
        %247 = vmatprep.subr.mxu0 0.0
        %248 = vmatpush1.msra.mxu0 0.0
        %249 = vmatprep.subr.mxu0 0.0
        %250 = vmatpush1.msra.mxu0 0.0
        %251 = vmatprep.subr.mxu0 0.0
        %252 = vmatpush1.msra.mxu0 0.0
        %253 = vmatprep.subr.mxu0 0.0
        %254 = vmatpush1.msra.mxu0 0.0
        %255 = vmatprep.subr.mxu0 0.0
        %256 = vmatpush1.msra.mxu0 0.0
        %257 = vmatprep.subr.mxu0 0.0
        %258 = vmatpush1.msra.mxu0 0.0
        %259 = vmatprep.subr.mxu0 0.0
        %260 = vmatpush1.msra.mxu0 0.0
        %261 = vmatprep.subr.mxu0 0.0
        %262 = vmatpush1.msra.mxu0 0.0
        %263 = vmatprep.subr.mxu0 0.0
        %264 = vmatpush1.msra.mxu0 0.0
        %265 = vmatprep.subr.mxu0 0.0
        %266 = vmatpush1.msra.mxu0 0.0
        %267 = vmatprep.subr.mxu0 0.0
        %268 = vmatpush1.msra.mxu0 0.0
        %269 = vmatprep.subr.mxu0 0.0
        %270 = vmatpush1.msra.mxu0 0.0
        %271 = vmatprep.subr.mxu0 0.0
        %272 = vmatpush1.msra.mxu0 0.0
        %273 = vmatprep.subr.mxu0 0.0
        %274 = vmatpush1.msra.mxu0 0.0
        %275 = vmatprep.subr.mxu0 0.0
        %276 = vmatpush1.msra.mxu0 0.0
        %277 = vmatprep.subr.mxu0 0.0
        %278 = vmatpush1.msra.mxu0 0.0
        %279 = vmatprep.subr.mxu0 0.0
        %280 = vmatpush1.msra.mxu0 0.0
        %281 = vmatprep.subr.mxu0 0.0
        %282 = vmatpush1.msra.mxu0 0.0
        %283 = vmatprep.subr.mxu0 0.0
        %284 = vmatpush1.msra.mxu0 0.0
        %285 = vmatprep.subr.mxu0 0.0
        %286 = vmatpush1.msra.mxu0 0.0
        %287 = vmatprep.subr.mxu0 0.0
        %288 = vmatpush1.msra.mxu0 0.0
        %289 = vmatprep.subr.mxu0 0.0
        %290 = vmatpush1.msra.mxu0 0.0
        %291 = vmatprep.mubr.f32.mxu0 0.0
        %292 = vmatmul.mubr.f32.gmra.mrb[0].mxu0 %v220
        %v293 = vpop.f32.mrb[0].mxu0
        %v294 = vadd.f32 %v214, %v293
        %v295 = vpop.f32.mrb[0].mxu0
        %v296 = vadd.f32 %v214, %v295
        %297 = vdwg.mxu0
        %v298 = vrcp.pop %v294
        %v299 = vrcp.pop %v296
        %v300 = vmul.f32 %v294, %v298
        %v301 = vmul.f32 %v296, %v299
        %v302 = vsub.f32 2.0, %v300
        %v303 = vsub.f32 2.0, %v301
        %v304 = vmul.f32 %v298, %v302
        %v305 = vmul.f32 %v299, %v303
        %v308 = vcombine.low %v304, %v305
        %v310 = vmul.f32 %v207, %v308
        %311 = vst [vmem:[%s204] sm:$0xff] %v310
        %s312 = sand.u32 %s112, 1
        %s313 = scalar_lea.sflag [#allocation4], %s312
        %s314 = sand.u32 %s112, 1
        %s315 = smul.addr %s314, 8
        %s316 = scalar_lea.vmem [#allocation5], %s315
        // Predicated region
        $region37: #{tpu_custom_call.1} parent=31 // pred_check
          %p317 = pneg %p122
        $region38: #{tpu_custom_call.1} parent=31 // pred_check_branch
          %319 = sbr.rel (%p317) target = $region40
        $region39: #{tpu_custom_call.1} parent=31 // pred_region
          %s320 = smul.u32 2, %s25
          %s322 = ssub.s32 128, 128
          %323 = vsyncadd %s313, %s322
          %s324 = smul.addr %s24, 2
          %s325 = sadd.s32 %s320, %s324
          %s326 = smul.addr %s325, 64
          %s327 = scalar_lea.hbm %s3, %s326
          %s329 = sshll.u32 %s316, 4
          %s330 = int_to_ptr.vmem [resolvable:$true] %s329
          %332 = dma.vmem_to_hbm [thread:$0]  %s330, 128, %s327, %s313
        $region40: #{tpu_custom_call.1} parent=31 // pred_fallthru
          _
      $region32: #{tpu_custom_call.1} parent=5 // pred_fallthru
        _
      %p333 = scmp.le.s32.totalorder 2, %s15
      // Predicated region
      $region41: #{tpu_custom_call.1} parent=5 // pred_check
        %p334 = pneg %p333
      $region42: #{tpu_custom_call.1} parent=5 // pred_check_branch
        %336 = sbr.rel (%p334) target = $region44
      $region43: #{tpu_custom_call.1} parent=5 // pred_region
        %s337 = ssub.s32 %s15, 2
        // Predicated region
        $region45: #{tpu_custom_call.1} parent=43 // pred_check
          %p338 = pneg %p128
        $region46: #{tpu_custom_call.1} parent=43 // pred_check_branch
          %340 = sbr.rel (%p338) target = $region48
        $region47: #{tpu_custom_call.1} parent=43 // pred_region
          %s341 = sand.u32 %s113, 1
          %s342 = scalar_lea.sflag [#allocation4], %s341
          %s343 = sand.u32 %s113, 1
          %s344 = smul.addr %s343, 8
          %s345 = scalar_lea.vmem [#allocation5], %s344
          %346 = dma.done %s342, 128
        $region48: #{tpu_custom_call.1} parent=43 // pred_fallthru
          _
      $region44: #{tpu_custom_call.1} parent=5 // pred_fallthru
        _
    $region6: #{tpu_custom_call.1} parent=1 // loop_footer
      %s19 = sadd.s32 1, %s15
    $region7: #{tpu_custom_call.1} parent=1 // loop_footer_branch
      %14 = sbr.rel target = $region3
    $region8: #{tpu_custom_call.1} parent=1 // loop_exit
      _
    %347 = vsyncpa [#allocation3], 1
    %s348 = scalar_lea.sflag [#allocation3], 1
    %349 = vsyncpa %s348, 1
    %350 = vsyncpa [#allocation4], 1
    %s351 = scalar_lea.sflag [#allocation4], 1
    %352 = vsyncpa %s351, 1

</llo_original>
